<compile_context>
chip_gen: v7x
topology: tpu7x:2x2x1
jax: 0.10.0
libtpu: 0.0.40
codegen_flags: <defaults>
</compile_context>

<pallas_src>
import jax
import jax.numpy as jnp
from jax.experimental import pallas as pl
from jax.experimental.pallas import tpu as pltpu

_LANE_CANDIDATES = (2048, 1024, 512, 256, 128)


def _sigmoid_kernel(x_ref, o_ref):
    # Compute in f32 regardless of input dtype (v5e has no bf16 VPU/EUP path).
    x = x_ref[...].astype(jnp.float32)
    # sigmoid(x) = 0.5*(tanh(x/2)+1): a single EUP transcendental (free VLIW
    # slot next to loads/stores) with no exp-overflow path for large |x|.
    o_ref[...] = (0.5 * (jnp.tanh(0.5 * x) + 1.0)).astype(o_ref.dtype)


def _sublane_multiple(dtype):
    # Sublane packing granularity: 8 rows for 32-bit, 16 for 16-bit, 32 for
    # 8-bit dtypes.
    return 32 // jnp.dtype(dtype).itemsize


def _vmem_plan():
    """Return (target block bytes, vmem_limit_bytes) tuned per generation."""
    try:
        cap = pltpu.get_tpu_info().vmem_capacity_bytes
    except Exception:
        cap = None
    if cap is not None and cap <= 80 * 1024 * 1024:
        # v7x-class (64 MiB VMEM, ~3.2 TB/s HBM): 8 MiB blocks amortize the
        # ~0.35 us per-step cost (double-buffered in+out = 32 MiB < limit).
        return 8 * 1024 * 1024, 44 * 1024 * 1024
    if cap is None:
        # Unknown chip: conservative, still-fast defaults.
        return 4 * 1024 * 1024, 32 * 1024 * 1024
    # v5e / v6e (128 MiB physical VMEM): roofline saturates ~4 MiB blocks.
    return 4 * 1024 * 1024, 64 * 1024 * 1024


def _plan_layout(total, sublane, elem_bytes):
    """Pick (lane_w, rows, needs_pad); avoid pad/slice whenever possible."""
    # Preferred: lane_w divides total AND rows is sublane-aligned, so the row
    # axis can be tiled and no wrapper pad / trailing slice HBM passes occur.
    for lw in _LANE_CANDIDATES:
        if total % (lw * sublane) == 0:
            return lw, total // lw, False
    # Next best: lane_w divides total but rows is not sublane-aligned.  Only
    # legal as a single full-array block, so require it to fit comfortably.
    for lw in _LANE_CANDIDATES:
        if total % lw == 0 and total * elem_bytes <= 4 * 1024 * 1024:
            return lw, total // lw, False
    # Rare fallback: pad to a sublane-aligned (rows, 1024) slab, slice after.
    lw = 1024
    rows = pl.cdiv(total, lw)
    rows = ((rows + sublane - 1) // sublane) * sublane
    return lw, rows, True


def _choose_tile_rows(rows, lane_w, sublane, elem_bytes, block_bytes_target):
    if rows % sublane != 0:
        # Single full-array block (block dims == array dims is always legal).
        return rows
    target_rows = max(sublane, block_bytes_target // (lane_w * elem_bytes))
    cap = target_rows
    if rows >= 2 * sublane:
        # Guarantee >= 2 grid steps so double-buffered pipelining engages and
        # both v7x TensorCores get work (no-op cost on single-TC v5e/v6e).
        cap = min(cap, rows // 2)
    cap = max(cap, sublane)
    # Largest tr that is a multiple of `sublane`, divides `rows` exactly (no
    # ragged boundary block / masked stores), and is <= cap.
    q = rows // sublane
    for d in range(min(cap // sublane, q), 0, -1):
        if q % d == 0:
            return d * sublane
    return sublane


def detached_convnet_forward(x):
    """Forward pass of DetachedConvNet: elementwise sigmoid(x)."""
    orig_shape = x.shape
    total = x.size
    elem_bytes = jnp.dtype(x.dtype).itemsize
    sublane = _sublane_multiple(x.dtype)

    block_bytes_target, vmem_limit = _vmem_plan()
    lane_w, rows, needs_pad = _plan_layout(total, sublane, elem_bytes)

    flat = x.reshape(-1)
    if needs_pad:
        flat = jnp.pad(flat, (0, rows * lane_w - total))
    x2d = flat.reshape(rows, lane_w)

    tr = _choose_tile_rows(rows, lane_w, sublane, elem_bytes, block_bytes_target)
    grid = (rows // tr,)

    out2d = pl.pallas_call(
        _sigmoid_kernel,
        out_shape=jax.ShapeDtypeStruct((rows, lane_w), x.dtype),
        grid_spec=pltpu.PrefetchScalarGridSpec(
            num_scalar_prefetch=0,
            grid=grid,
            in_specs=[pl.BlockSpec((tr, lane_w), lambda i: (i, 0))],
            out_specs=pl.BlockSpec((tr, lane_w), lambda i: (i, 0)),
        ),
        compiler_params=pltpu.CompilerParams(
            # Independent row tiles -> shard across both v7x TensorCores.
            dimension_semantics=("parallel",),
            vmem_limit_bytes=vmem_limit,
        ),
    )(x2d)

    if needs_pad:
        return out2d.reshape(-1)[:total].reshape(orig_shape)
    return out2d.reshape(orig_shape)


if __name__ == "__main__":
    # DetachedConvNet(n_channels, filters, stride) creates no parameters;
    # forward only applies sigmoid.  Small deterministic NCHW input.
    key = jax.random.PRNGKey(0)
    x = jax.random.normal(key, (2, 4, 16, 16), dtype=jnp.float32)

    out = detached_convnet_forward(x)
    out = jax.block_until_ready(out)

    ref = jax.nn.sigmoid(x)
    assert out.shape == x.shape and out.dtype == x.dtype
    assert jnp.allclose(out, ref, atol=1e-6, rtol=1e-6)

    # Second check exercising the multi-step (pipelined / dual-TC) grid path.
    x_big = jax.random.normal(jax.random.PRNGKey(1), (8, 64, 32, 32),
                              dtype=jnp.float32)
    out_big = jax.block_until_ready(detached_convnet_forward(x_big))
    assert jnp.allclose(out_big, jax.nn.sigmoid(x_big), atol=1e-6, rtol=1e-6)

    print("KERNEL_OK")
</pallas_src>

<mosaic_0001>
module attributes {stable_mosaic.version = 11 : i64} {
  func.func @_sigmoid_kernel(%arg0: i32, %arg1: memref<8x256xf32, #tpu.memory_space<vmem>>, %arg2: memref<8x256xf32, #tpu.memory_space<vmem>>) attributes {dimension_semantics = [#tpu.dimension_semantics<parallel>], iteration_bounds = array<i64: 1>, scalar_prefetch = 0 : i64, scratch_operands = 0 : i64, tpu.core_type = #tpu.core_type<tc>, window_params = [{transform_indices = @transform_0, window_bounds = array<i64: 8, 256>}, {transform_indices = @transform_1, window_bounds = array<i64: 8, 256>}]} {
    %c0 = arith.constant 0 : index
    %c0_0 = arith.constant 0 : index
    %0 = vector.load %arg1[%c0, %c0_0] : memref<8x256xf32, #tpu.memory_space<vmem>>, vector<8x256xf32>
    %cst = arith.constant 5.000000e-01 : f32
    %1 = vector.broadcast %cst : f32 to vector<8x256xf32>
    %2 = arith.mulf %1, %0 : vector<8x256xf32>
    %3 = math.tanh %2 : vector<8x256xf32>
    %cst_1 = arith.constant 1.000000e+00 : f32
    %4 = vector.broadcast %cst_1 : f32 to vector<8x256xf32>
    %5 = arith.addf %3, %4 : vector<8x256xf32>
    %cst_2 = arith.constant 5.000000e-01 : f32
    %6 = vector.broadcast %cst_2 : f32 to vector<8x256xf32>
    %7 = arith.mulf %6, %5 : vector<8x256xf32>
    %c0_3 = arith.constant 0 : index
    %c0_4 = arith.constant 0 : index
    %8 = vector.load %arg2[%c0_3, %c0_4] : memref<8x256xf32, #tpu.memory_space<vmem>>, vector<8x256xf32>
    tpu.vector_store %arg2[%c0_3, %c0_4], %7 {strides = array<i32>} : memref<8x256xf32, #tpu.memory_space<vmem>>, vector<8x256xf32>,
    return
  }
  func.func @transform_0(%arg0: i32) -> (i32, i32) {
    %c0_i32 = arith.constant 0 : i32
    %c0_i32_0 = arith.constant 0 : i32
    return %arg0, %c0_i32 : i32, i32
  }
  func.func @transform_1(%arg0: i32) -> (i32, i32) {
    %c0_i32 = arith.constant 0 : i32
    %c0_i32_0 = arith.constant 0 : i32
    return %arg0, %c0_i32 : i32, i32
  }
}

</mosaic_0001>

<llo_original>
// kernel: tpu_custom_call.1
$region0: #{tpu_custom_call.1}
  #allocation0 [shape = 'u32[]', space=smem, size = 0x4, offset = 0x4, fixed_abs, tag = 'smem constant byte address 0x4 - core index']
  #allocation1 [shape = 'u32[144,128]{1,0:T(1,128)}', space=vmem, size = 0x12000, scoped, tag = 'internal scratch']
  %s0 = inlined_call_operand.hbm [shape: f32[8,256], index: 0, kind: input, shape index: {}]
  %s1 = inlined_call_operand.hbm [shape: f32[8,256], index: 1, kind: output, shape index: {}]
  %s2 = sld [smem:[#allocation0]]
  $region18: #{tpu_custom_call.1} parent=0
    _
  %s4 = ssub.s32 1, %s2
  %s5 = scalar_select 0, %s4, %s2
  $region1: #{tpu_custom_call.1} parent=0
    #allocation2 [shape = 'u8[8192]{0}', space=vmem, size = 0x2000, scoped, tag = 'input window, operand 0, single buffered']
    #allocation3 [shape = 's32[1]{0}', space=sflag, size = 0x4, scoped, tag = 'scoped memory for tpu_custom_call.1']
    #allocation4 [shape = 's32[1]{0}', space=sflag, size = 0x4, scoped, tag = 'scoped memory for tpu_custom_call.1']
    #allocation5 [shape = 'u8[8192]{0}', space=vmem, size = 0x2000, scoped, tag = 'output window, operand 0, single buffered']
    %6 = vsyncpa [#allocation3], 0
    %7 = vsyncpa [#allocation4], 0
    // Predicated region
    $region2: #{tpu_custom_call.1} parent=1 // pred_check
      _
    $region3: #{tpu_custom_call.1} parent=1 // pred_check_branch
      %9 = sbr.rel (0) target = $region5
    $region4: #{tpu_custom_call.1} parent=1 // pred_region
      %s11 = ssub.s32 256, 256
      %12 = vsyncadd [#allocation3], %s11
      %s14 = sshll.u32 [#allocation2], 4
      %s15 = int_to_ptr.vmem [resolvable:$true] %s14
      %17 = dma.hbm_to_vmem [thread:$0]  %s0, 256, %s15, [#allocation3]
    $region5: #{tpu_custom_call.1} parent=1 // pred_fallthru
      _
    // Predicated region
    $region6: #{tpu_custom_call.1} parent=1 // pred_check
      _
    $region7: #{tpu_custom_call.1} parent=1 // pred_check_branch
      %19 = sbr.rel (0) target = $region9
    $region8: #{tpu_custom_call.1} parent=1 // pred_region
      %20 = dma.done [#allocation3], 256
    $region9: #{tpu_custom_call.1} parent=1 // pred_fallthru
      _
    %v21 = vld [vmem:[#allocation2] sm:$0xff]
    %v22 = vld [vmem:[#allocation2 + $0x8] sm:$0xff]
    %v23 = vmul.f32 %v21, 0.5
    %v24 = vmul.f32 %v22, 0.5
    %v25 = vtanh.pop %v23
    %v26 = vtanh.pop %v24
    %v27 = vadd.f32 %v25, 1.0
    %v28 = vadd.f32 %v26, 1.0
    %v29 = vmul.f32 %v27, 0.5
    %v30 = vmul.f32 %v28, 0.5
    %31 = vst [vmem:[#allocation5] sm:$0xff] %v29
    %32 = vst [vmem:[#allocation5 + $0x8] sm:$0xff] %v30
    // Predicated region
    $region10: #{tpu_custom_call.1} parent=1 // pred_check
      _
    $region11: #{tpu_custom_call.1} parent=1 // pred_check_branch
      %34 = sbr.rel (0) target = $region13
    $region12: #{tpu_custom_call.1} parent=1 // pred_region
      %s36 = ssub.s32 256, 256
      %37 = vsyncadd [#allocation4], %s36
      %s39 = sshll.u32 [#allocation5], 4
      %s40 = int_to_ptr.vmem [resolvable:$true] %s39
      %42 = dma.vmem_to_hbm [thread:$0]  %s40, 256, %s1, [#allocation4]
    $region13: #{tpu_custom_call.1} parent=1 // pred_fallthru
      _
    // Predicated region
    $region14: #{tpu_custom_call.1} parent=1 // pred_check
      _
    $region15: #{tpu_custom_call.1} parent=1 // pred_check_branch
      %44 = sbr.rel (0) target = $region17
    $region16: #{tpu_custom_call.1} parent=1 // pred_region
      %45 = dma.done [#allocation4], 256
    $region17: #{tpu_custom_call.1} parent=1 // pred_fallthru
      _
    %46 = vsyncpa [#allocation3], 1
    %47 = vsyncpa [#allocation4], 1

</llo_original>
